<compile_context>
chip_gen: v6e
topology: v6e:2x2x1
jax: 0.10.0
libtpu: 0.0.40
codegen_flags: <defaults>
</compile_context>

<pallas_src>
import math

import jax
import jax.numpy as jnp
from jax.experimental import pallas as pl
from jax.experimental.pallas import tpu as pltpu

_LANE = 512            # lane-dense last dim (multiple of 128)
_MAX_TILE_ROWS = 512   # 512x512 f32 = 1 MiB/tile; fits all generations double-buffered
_GOLDEN_I32 = 0x9E3779B1 - (1 << 32)   # golden-ratio odd constant as int32


def _round_up(x, m):
    return ((x + m - 1) // m) * m


def _activation_shaping_kernel(seed_ref, a_ref, o_ref):
    tr, tl = a_ref.shape
    pid = pl.program_id(0)

    # Global linear index of every element of this tile (wraps mod 2**32 for
    # enormous tensors, which is fine for hashing).
    row = jax.lax.broadcasted_iota(jnp.int32, (tr, tl), 0)
    col = jax.lax.broadcasted_iota(jnp.int32, (tr, tl), 1)
    idx = (pid * tr + row) * tl + col

    # Counter-based hash (multiplicative mix + murmur3 fmix32 finalizer).
    # Pure 32-bit integer VPU ops; top bit is set with probability 1/2,
    # matching randn_like(A) < 0.
    z = idx * jnp.int32(_GOLDEN_I32) + seed_ref[0]
    x = z.astype(jnp.uint32)
    x = x ^ (x >> 16)
    x = x * jnp.uint32(0x7FEB352D)
    x = x ^ (x >> 15)
    x = x * jnp.uint32(0x846CA68B)
    x = x ^ (x >> 16)
    m_keep = (x >> 31) != 0

    keep = (a_ref[...] > 0) & m_keep
    o_ref[...] = keep.astype(o_ref.dtype)


def activation_shaping(A, M=None, *, seed=0):
    """Pallas implementation of ActivationShapingLayer.forward(A, M).

    M is accepted for API parity but ignored (the PyTorch layer overwrites it
    with a fresh random mask).
    """
    del M
    orig_shape = A.shape
    out_dtype = A.dtype if jnp.issubdtype(A.dtype, jnp.floating) else jnp.float32
    total = math.prod(orig_shape)

    # Lane-dense, (8,128)-aligned 2-D view, independent of H*W.
    rows_needed = pl.cdiv(total, _LANE)
    if rows_needed >= _MAX_TILE_ROWS:
        tile_rows = _MAX_TILE_ROWS
    else:
        tile_rows = _round_up(max(rows_needed, 8), 8)
    rows = _round_up(rows_needed, tile_rows)
    padded_total = rows * _LANE

    a_flat = jnp.ravel(A)
    if padded_total != total:
        a_flat = jnp.pad(a_flat, (0, padded_total - total))
    a2d = a_flat.reshape(rows, _LANE)

    seed_arr = jnp.asarray([seed], dtype=jnp.int32)
    grid = (rows // tile_rows,)

    out2d = pl.pallas_call(
        _activation_shaping_kernel,
        out_shape=jax.ShapeDtypeStruct((rows, _LANE), out_dtype),
        grid=grid,
        in_specs=[
            pl.BlockSpec(memory_space=pltpu.MemorySpace.SMEM),    # seed scalar
            pl.BlockSpec((tile_rows, _LANE), lambda i: (i, 0)),   # activation tile
        ],
        out_specs=pl.BlockSpec((tile_rows, _LANE), lambda i: (i, 0)),
        compiler_params=pltpu.CompilerParams(
            dimension_semantics=("parallel",)),
    )(seed_arr, a2d)

    out_flat = out2d.reshape(-1)
    if padded_total != total:
        out_flat = out_flat[:total]
    return out_flat.reshape(orig_shape)


if __name__ == "__main__":
    key = jax.random.PRNGKey(0)
    ka, km = jax.random.split(key)
    # Small NCHW conv-activation shapes.
    A = jax.random.normal(ka, (2, 4, 16, 16), dtype=jnp.float32)
    M = jax.random.normal(km, (2, 4, 16, 16), dtype=jnp.float32)  # ignored, as in PyTorch

    out = activation_shaping(A, M, seed=0)
    out = jax.block_until_ready(out)

    # Semantics checks: output is {0,1}, dtype/shape match, zero wherever A<=0,
    # and roughly half of the positive activations survive the random mask.
    assert out.shape == A.shape and out.dtype == A.dtype
    assert bool(jnp.all((out == 0.0) | (out == 1.0)))
    assert bool(jnp.all(out[A <= 0] == 0.0))
    frac_kept = float(jnp.mean(out[A > 0]))
    assert 0.3 < frac_kept < 0.7, frac_kept

    print("KERNEL_OK")
</pallas_src>

<mosaic_0001>
module attributes {stable_mosaic.version = 11 : i64} {
  func.func @_activation_shaping_kernel(%arg0: i32, %arg1: memref<1xi32, #tpu.memory_space<smem>>, %arg2: memref<8x512xf32, #tpu.memory_space<vmem>>, %arg3: memref<8x512xf32, #tpu.memory_space<vmem>>) attributes {dimension_semantics = [#tpu.dimension_semantics<parallel>], iteration_bounds = array<i64: 1>, scalar_prefetch = 0 : i64, scratch_operands = 0 : i64, tpu.core_type = #tpu.core_type<tc>, window_params = [{transform_indices = @transform_0, window_bounds = array<i64: 1>}, {transform_indices = @transform_1, window_bounds = array<i64: 8, 512>}, {transform_indices = @transform_2, window_bounds = array<i64: 8, 512>}]} {
    %0 = tpu.iota {dimensions = array<i32: 0>} : vector<8x512xi32>
    %1 = tpu.iota {dimensions = array<i32: 1>} : vector<8x512xi32>
    %c8_i32 = arith.constant 8 : i32
    %2 = arith.muli %arg0, %c8_i32 : i32
    %3 = vector.broadcast %2 : i32 to vector<8x512xi32>
    %4 = arith.addi %3, %0 : vector<8x512xi32>
    %c512_i32 = arith.constant 512 : i32
    %5 = vector.broadcast %c512_i32 : i32 to vector<8x512xi32>
    %6 = arith.muli %4, %5 : vector<8x512xi32>
    %7 = arith.addi %6, %1 : vector<8x512xi32>
    %c-1640531535_i32 = arith.constant -1640531535 : i32
    %8 = vector.broadcast %c-1640531535_i32 : i32 to vector<8x512xi32>
    %9 = arith.muli %7, %8 : vector<8x512xi32>
    %c0 = arith.constant 0 : index
    %10 = memref.load %arg1[%c0] : memref<1xi32, #tpu.memory_space<smem>>
    %11 = vector.broadcast %10 : i32 to vector<8x512xi32>
    %12 = arith.addi %9, %11 : vector<8x512xi32>
    %c16_i32 = arith.constant 16 : i32
    %13 = vector.broadcast %c16_i32 : i32 to vector<8x512xi32>
    %14 = arith.shrui %12, %13 : vector<8x512xi32>
    %15 = arith.xori %12, %14 : vector<8x512xi32>
    %c2146121005_i32 = arith.constant 2146121005 : i32
    %16 = vector.broadcast %c2146121005_i32 : i32 to vector<8x512xi32>
    %17 = arith.muli %15, %16 : vector<8x512xi32>
    %c15_i32 = arith.constant 15 : i32
    %18 = vector.broadcast %c15_i32 : i32 to vector<8x512xi32>
    %19 = arith.shrui %17, %18 : vector<8x512xi32>
    %20 = arith.xori %17, %19 : vector<8x512xi32>
    %c-2073254261_i32 = arith.constant -2073254261 : i32
    %21 = vector.broadcast %c-2073254261_i32 : i32 to vector<8x512xi32>
    %22 = arith.muli %20, %21 : vector<8x512xi32>
    %c16_i32_0 = arith.constant 16 : i32
    %23 = vector.broadcast %c16_i32_0 : i32 to vector<8x512xi32>
    %24 = arith.shrui %22, %23 : vector<8x512xi32>
    %25 = arith.xori %22, %24 : vector<8x512xi32>
    %c31_i32 = arith.constant 31 : i32
    %26 = vector.broadcast %c31_i32 : i32 to vector<8x512xi32>
    %27 = arith.shrui %25, %26 : vector<8x512xi32>
    %c0_i32 = arith.constant 0 : i32
    %28 = vector.broadcast %c0_i32 : i32 to vector<8x512xi32>
    %29 = arith.cmpi ne, %27, %28 : vector<8x512xi32>
    %c0_1 = arith.constant 0 : index
    %c0_2 = arith.constant 0 : index
    %30 = vector.load %arg2[%c0_1, %c0_2] : memref<8x512xf32, #tpu.memory_space<vmem>>, vector<8x512xf32>
    %cst = arith.constant 0.000000e+00 : f32
    %31 = vector.broadcast %cst : f32 to vector<8x512xf32>
    %32 = arith.cmpf ogt, %30, %31 : vector<8x512xf32>
    %33 = arith.andi %32, %29 : vector<8x512xi1>
    %34 = arith.extui %33 : vector<8x512xi1> to vector<8x512xi32>
    %35 = arith.sitofp %34 : vector<8x512xi32> to vector<8x512xf32>
    %c0_3 = arith.constant 0 : index
    %c0_4 = arith.constant 0 : index
    %36 = vector.load %arg3[%c0_3, %c0_4] : memref<8x512xf32, #tpu.memory_space<vmem>>, vector<8x512xf32>
    tpu.vector_store %arg3[%c0_3, %c0_4], %35 {strides = array<i32>} : memref<8x512xf32, #tpu.memory_space<vmem>>, vector<8x512xf32>,
    return
  }
  func.func @transform_0(%arg0: i32) -> i32 {
    %c0_i32 = arith.constant 0 : i32
    %c0_i32_0 = arith.constant 0 : i32
    return %c0_i32 : i32
  }
  func.func @transform_1(%arg0: i32) -> (i32, i32) {
    %c0_i32 = arith.constant 0 : i32
    %c0_i32_0 = arith.constant 0 : i32
    return %arg0, %c0_i32 : i32, i32
  }
  func.func @transform_2(%arg0: i32) -> (i32, i32) {
    %c0_i32 = arith.constant 0 : i32
    %c0_i32_0 = arith.constant 0 : i32
    return %arg0, %c0_i32 : i32, i32
  }
}

</mosaic_0001>

<llo_original>
// kernel: tpu_custom_call.1
$region0: #{tpu_custom_call.1}
  #allocation0 [shape = 'u32[]', space=smem, size = 0x4, offset = 0x4, fixed_abs, tag = 'smem constant byte address 0x4 - core index']
  #allocation1 [shape = 'u32[144,128]{1,0:T(1,128)}', space=vmem, size = 0x12000, scoped, tag = 'internal scratch']
  #allocation2 [shape = 's32[1]{0:T(128)S(6)}', space=smem, size = 0x200, scoped, tag = 'scoped memory for tpu_custom_call.1']
  %s0 = inlined_call_operand.<no memory space> [shape: s32[1], index: 0, kind: input, shape index: {}]
  %s1 = inlined_call_operand.hbm [shape: f32[8,512], index: 1, kind: input, shape index: {}]
  %s2 = inlined_call_operand.hbm [shape: f32[8,512], index: 2, kind: output, shape index: {}]
  %s3 = sld [smem:[#allocation0]]
  $region22: #{tpu_custom_call.1} parent=0
    _
  %s5 = ssub.s32 1, %s3
  %s6 = scalar_select 0, %s5, %s3
  %7 = sst [smem:[#allocation2]] %s0
  $region1: #{tpu_custom_call.1} parent=0
    #allocation3 [shape = 'u8[16384]{0}', space=vmem, size = 0x4000, scoped, tag = 'input window, operand 1, single buffered']
    #allocation4 [shape = 's32[1]{0}', space=sflag, size = 0x4, scoped, tag = 'scoped memory for tpu_custom_call.1']
    #allocation5 [shape = 's32[1]{0}', space=sflag, size = 0x4, scoped, tag = 'scoped memory for tpu_custom_call.1']
    #allocation6 [shape = 'u8[16384]{0}', space=vmem, size = 0x4000, scoped, tag = 'output window, operand 0, single buffered']
    %8 = vsyncpa [#allocation4], 0
    %9 = vsyncpa [#allocation5], 0
    // Predicated region
    $region2: #{tpu_custom_call.1} parent=1 // pred_check
      _
    $region3: #{tpu_custom_call.1} parent=1 // pred_check_branch
      %11 = sbr.rel (0) target = $region5
    $region4: #{tpu_custom_call.1} parent=1 // pred_region
      _
    $region5: #{tpu_custom_call.1} parent=1 // pred_fallthru
      _
    // Predicated region
    $region6: #{tpu_custom_call.1} parent=1 // pred_check
      _
    $region7: #{tpu_custom_call.1} parent=1 // pred_check_branch
      %13 = sbr.rel (0) target = $region9
    $region8: #{tpu_custom_call.1} parent=1 // pred_region
      %s15 = ssub.s32 512, 512
      %16 = vsyncadd [#allocation4], %s15
      %s18 = sshll.u32 [#allocation3], 4
      %s19 = int_to_ptr.vmem [resolvable:$true] %s18
      %21 = dma.hbm_to_vmem [thread:$0]  %s1, 512, %s19, [#allocation4]
    $region9: #{tpu_custom_call.1} parent=1 // pred_fallthru
      _
    // Predicated region
    $region10: #{tpu_custom_call.1} parent=1 // pred_check
      _
    $region11: #{tpu_custom_call.1} parent=1 // pred_check_branch
      %23 = sbr.rel (0) target = $region13
    $region12: #{tpu_custom_call.1} parent=1 // pred_region
      %24 = dma.done [#allocation4], 512
    $region13: #{tpu_custom_call.1} parent=1 // pred_fallthru
      _
    %v25 = vlaneseq
    %v26 = vshrl.u32 %v25, 7
    %v27 = vlaneseq
    %v28 = vand.u32 %v27, 127
    %v29 = vadd.s32 %v28, 128
    %v30 = vadd.s32 %v28, 256
    %v31 = vadd.s32 %v28, 384
    %s32 = smul.u32 0, 8
    %v33 = vstv %s32
    %v34 = vadd.s32 %v33, %v26
    %v35 = vmul.u32 %v34, 512
    %v36 = vadd.s32 %v35, %v28
    %v37 = vadd.s32 %v35, %v29
    %v38 = vadd.s32 %v35, %v30
    %v39 = vadd.s32 %v35, %v31
    %v40 = vmul.u32 %v36, 2654435761
    %v41 = vmul.u32 %v37, 2654435761
    %v42 = vmul.u32 %v38, 2654435761
    %v43 = vmul.u32 %v39, 2654435761
    %s44 = sld [smem:[#allocation2]]
    %v45 = vstv %s44
    %v46 = vadd.s32 %v40, %v45
    %v47 = vadd.s32 %v41, %v45
    %v48 = vadd.s32 %v42, %v45
    %v49 = vadd.s32 %v43, %v45
    %v50 = vshrl.u32 %v46, 16
    %v51 = vshrl.u32 %v47, 16
    %v52 = vshrl.u32 %v48, 16
    %v53 = vshrl.u32 %v49, 16
    %v54 = vxor.u32 %v46, %v50
    %v55 = vxor.u32 %v47, %v51
    %v56 = vxor.u32 %v48, %v52
    %v57 = vxor.u32 %v49, %v53
    %v58 = vmul.u32 %v54, 2146121005
    %v59 = vmul.u32 %v55, 2146121005
    %v60 = vmul.u32 %v56, 2146121005
    %v61 = vmul.u32 %v57, 2146121005
    %v62 = vshrl.u32 %v58, 15
    %v63 = vshrl.u32 %v59, 15
    %v64 = vshrl.u32 %v60, 15
    %v65 = vshrl.u32 %v61, 15
    %v66 = vxor.u32 %v58, %v62
    %v67 = vxor.u32 %v59, %v63
    %v68 = vxor.u32 %v60, %v64
    %v69 = vxor.u32 %v61, %v65
    %v70 = vmul.u32 %v66, 2221713035
    %v71 = vmul.u32 %v67, 2221713035
    %v72 = vmul.u32 %v68, 2221713035
    %v73 = vmul.u32 %v69, 2221713035
    %v74 = vshrl.u32 %v70, 16
    %v75 = vshrl.u32 %v71, 16
    %v76 = vshrl.u32 %v72, 16
    %v77 = vshrl.u32 %v73, 16
    %v78 = vxor.u32 %v70, %v74
    %v79 = vxor.u32 %v71, %v75
    %v80 = vxor.u32 %v72, %v76
    %v81 = vxor.u32 %v73, %v77
    %v82 = vshrl.u32 %v78, 31
    %v83 = vshrl.u32 %v79, 31
    %v84 = vshrl.u32 %v80, 31
    %v85 = vshrl.u32 %v81, 31
    %vm86 = vcmp.ne.s32.totalorder %v82, 0
    %vm87 = vcmp.ne.s32.totalorder %v83, 0
    %vm88 = vcmp.ne.s32.totalorder %v84, 0
    %vm89 = vcmp.ne.s32.totalorder %v85, 0
    %v90 = vld [vmem:[#allocation3] sm:$0xff]
    %v91 = vld [vmem:[#allocation3 + $0x8] sm:$0xff]
    %v92 = vld [vmem:[#allocation3 + $0x10] sm:$0xff]
    %v93 = vld [vmem:[#allocation3 + $0x18] sm:$0xff]
    %vm94 = vcmp.gt.f32.partialorder %v90, 0.0
    %vm95 = vcmp.gt.f32.partialorder %v91, 0.0
    %vm96 = vcmp.gt.f32.partialorder %v92, 0.0
    %vm97 = vcmp.gt.f32.partialorder %v93, 0.0
    %vm98 = vmand %vm94, %vm86
    %vm99 = vmand %vm95, %vm87
    %vm100 = vmand %vm96, %vm88
    %vm101 = vmand %vm97, %vm89
    %v102 = vsel %vm98, 1, 0
    %v103 = vsel %vm99, 1, 0
    %v104 = vsel %vm100, 1, 0
    %v105 = vsel %vm101, 1, 0
    %v106 = vcvt.s32.f32 %v102
    %v107 = vcvt.s32.f32 %v103
    %v108 = vcvt.s32.f32 %v104
    %v109 = vcvt.s32.f32 %v105
    %110 = vst [vmem:[#allocation6] sm:$0xff] %v106
    %111 = vst [vmem:[#allocation6 + $0x8] sm:$0xff] %v107
    %112 = vst [vmem:[#allocation6 + $0x10] sm:$0xff] %v108
    %113 = vst [vmem:[#allocation6 + $0x18] sm:$0xff] %v109
    // Predicated region
    $region14: #{tpu_custom_call.1} parent=1 // pred_check
      _
    $region15: #{tpu_custom_call.1} parent=1 // pred_check_branch
      %115 = sbr.rel (0) target = $region17
    $region16: #{tpu_custom_call.1} parent=1 // pred_region
      %s117 = ssub.s32 512, 512
      %118 = vsyncadd [#allocation5], %s117
      %s120 = sshll.u32 [#allocation6], 4
      %s121 = int_to_ptr.vmem [resolvable:$true] %s120
      %123 = dma.vmem_to_hbm [thread:$0]  %s121, 512, %s2, [#allocation5]
    $region17: #{tpu_custom_call.1} parent=1 // pred_fallthru
      _
    // Predicated region
    $region18: #{tpu_custom_call.1} parent=1 // pred_check
      _
    $region19: #{tpu_custom_call.1} parent=1 // pred_check_branch
      %125 = sbr.rel (0) target = $region21
    $region20: #{tpu_custom_call.1} parent=1 // pred_region
      %126 = dma.done [#allocation5], 512
    $region21: #{tpu_custom_call.1} parent=1 // pred_fallthru
      _
    %127 = vsyncpa [#allocation4], 1
    %128 = vsyncpa [#allocation5], 1

</llo_original>
